<compile_context>
chip_gen: v7x
topology: tpu7x:2x2x1
jax: 0.10.0
libtpu: 0.0.40
codegen_flags: <defaults>
</compile_context>

<pallas_src>
import jax
import jax.numpy as jnp
from jax.experimental import pallas as pl
from jax.experimental.pallas import tpu as pltpu


def _round_up(x, m):
    return ((x + m - 1) // m) * m


def mlp_kernel(x_ref, w1_ref, b1_ref, w2_ref, b2_ref, out_ref, emb_ref):
    # Cast x to bf16 in-kernel (free on the VPU) instead of a separate XLA pass.
    x_bf = x_ref[...].astype(jnp.bfloat16)

    # Layer 1: Linear (bf16 MXU operands, f32 accumulate) + bias + ReLU (f32 VPU).
    h = jnp.dot(x_bf, w1_ref[...], preferred_element_type=jnp.float32)
    h = jnp.maximum(h + b1_ref[...], 0.0)

    # Penultimate layer stored in bf16 (halves the dominant HBM write stream);
    # the same bf16 tensor feeds the second MXU matmul.
    h_bf = h.astype(jnp.bfloat16)
    emb_ref[...] = h_bf

    # Layer 2: Linear (bf16 MXU operands, f32 accumulate) + bias.
    o = jnp.dot(h_bf, w2_ref[...], preferred_element_type=jnp.float32)
    out_ref[...] = (o + b2_ref[...]).astype(out_ref.dtype)


def prepare_params(w1, b1, w2, b2):
    """One-time weight preprocessing (hoisted out of the per-call forward).

    Pads only the *output* feature axes (embSize, num_classes) up to multiples
    of 128 for lane-dense MXU pushes / unmasked stores and casts the weight
    matrices to bf16.  Biases stay f32 (added post-accumulation).

    w1: [dim, embSize]   (pre-transposed vs torch's [embSize, dim])
    b1: [1, embSize] or [embSize]
    w2: [embSize, num_classes]
    b2: [1, num_classes] or [num_classes]
    """
    dim, emb_size = w1.shape
    num_classes = w2.shape[1]
    emb_p = _round_up(emb_size, 128)
    nc_p = _round_up(num_classes, 128)

    w1_p = jnp.zeros((dim, emb_p), jnp.bfloat16).at[:, :emb_size].set(
        w1.astype(jnp.bfloat16))
    b1_p = jnp.zeros((1, emb_p), jnp.float32).at[:, :emb_size].set(
        b1.reshape(1, -1).astype(jnp.float32))
    w2_p = jnp.zeros((emb_p, nc_p), jnp.bfloat16).at[:emb_size, :num_classes].set(
        w2.astype(jnp.bfloat16))
    b2_p = jnp.zeros((1, nc_p), jnp.float32).at[:, :num_classes].set(
        b2.reshape(1, -1).astype(jnp.float32))
    return (w1_p, b1_p, w2_p, b2_p), (dim, emb_size, num_classes)


def _vmem_budget():
    """~85% of this generation's VMEM capacity (conservative fallback: 64 MiB)."""
    try:
        cap = pltpu.get_tpu_info().vmem_capacity_bytes
    except Exception:  # pragma: no cover - interpret mode / unexpected API
        cap = 64 << 20
    cap = min(int(cap), 128 << 20)
    return int(cap * 0.85)


def _choose_tile(batch, dim, emb_p, nc_p, block_b, vmem_budget):
    """Pick a batch tile that fits the VMEM budget and keeps >= ~4 grid tiles."""

    def footprint(t):
        x_tile = 2 * t * dim * 4                        # double-buffered f32 x tile
        weights = (dim * emb_p + emb_p * nc_p) * 2 + (emb_p + nc_p) * 4  # Buffered(1)
        out_tile = 2 * t * nc_p * 4                     # double-buffered f32 logits
        emb_tile = 2 * t * emb_p * 2                    # double-buffered bf16 emb
        interm = t * dim * 2 + t * emb_p * (4 + 2)      # x bf16 + h f32 + h bf16
        return x_tile + weights + out_tile + emb_tile + interm

    if batch <= 128:
        # Single full-extent block: always legal, no masking, nothing to split.
        return batch

    tb = min(_round_up(block_b, 128), _round_up(batch, 128))
    # Keep at least ~4 batch tiles so both v7x TensorCores get work under
    # dimension_semantics=("parallel",) and the DMA pipeline has overlap.
    tb = min(tb, max(128, _round_up(-(-batch // 4), 128)))
    while tb > 128 and footprint(tb) > vmem_budget:
        tb = max(128, tb // 2)
    return tb


def mlp_classifier_forward(x, prepared, *, block_b=1024):
    """Fused MLP forward.

    x        : any shape; flattened to [B, dim] like torch's view(-1, dim)
    prepared : output of prepare_params(w1, b1, w2, b2)
    returns (out [B, num_classes] f32, emb [B, embSize] bf16)
    """
    (w1_p, b1_p, w2_p, b2_p), (dim, emb_size, num_classes) = prepared
    emb_p = w1_p.shape[1]
    nc_p = w2_p.shape[1]

    x2d = x.reshape(-1, dim).astype(jnp.float32)
    batch = x2d.shape[0]

    vmem_budget = _vmem_budget()
    tb = _choose_tile(batch, dim, emb_p, nc_p, block_b, vmem_budget)
    grid = (pl.cdiv(batch, tb),)

    flops = 2 * batch * dim * emb_p + 2 * batch * emb_p * nc_p
    bytes_accessed = (batch * dim * 4                    # x read (f32)
                      + w1_p.size * 2 + w2_p.size * 2    # bf16 weights
                      + b1_p.size * 4 + b2_p.size * 4
                      + batch * nc_p * 4                 # logits write (f32)
                      + batch * emb_p * 2)               # emb write (bf16)

    out_p, emb_arr = pl.pallas_call(
        mlp_kernel,
        grid=grid,
        out_shape=(
            jax.ShapeDtypeStruct((batch, nc_p), jnp.float32),
            jax.ShapeDtypeStruct((batch, emb_p), jnp.bfloat16),
        ),
        in_specs=[
            # Streamed activation tile (double-buffered by default).
            pl.BlockSpec((tb, dim), lambda i: (i, 0)),
            # Resident operands: constant index_map -> fetched once; Buffered(1)
            # single-buffers them to halve resident-weight VMEM.
            pl.BlockSpec((dim, emb_p), lambda i: (0, 0),
                         pipeline_mode=pl.Buffered(1)),
            pl.BlockSpec((1, emb_p), lambda i: (0, 0),
                         pipeline_mode=pl.Buffered(1)),
            pl.BlockSpec((emb_p, nc_p), lambda i: (0, 0),
                         pipeline_mode=pl.Buffered(1)),
            pl.BlockSpec((1, nc_p), lambda i: (0, 0),
                         pipeline_mode=pl.Buffered(1)),
        ],
        out_specs=(
            pl.BlockSpec((tb, nc_p), lambda i: (i, 0)),   # lane-dense logits tile
            pl.BlockSpec((tb, emb_p), lambda i: (i, 0)),  # lane-dense bf16 emb tile
        ),
        compiler_params=pltpu.CompilerParams(
            dimension_semantics=("parallel",),
            vmem_limit_bytes=vmem_budget,
        ),
        cost_estimate=pl.CostEstimate(
            flops=flops, transcendentals=0, bytes_accessed=bytes_accessed),
    )(x2d, w1_p, b1_p, w2_p, b2_p)

    # Only slice when the feature axes were actually padded (no batch padding).
    out = out_p if nc_p == num_classes else out_p[:, :num_classes]
    emb = emb_arr if emb_p == emb_size else emb_arr[:, :emb_size]
    return out, emb


def init_params(key, dim, emb_size, num_classes):
    """Deterministic init mimicking torch.nn.Linear default (uniform +-1/sqrt(fan_in))."""
    k1, k2, k3, k4 = jax.random.split(key, 4)
    bound1 = 1.0 / jnp.sqrt(jnp.float32(dim))
    bound2 = 1.0 / jnp.sqrt(jnp.float32(emb_size))
    w1 = jax.random.uniform(k1, (dim, emb_size), jnp.float32, -bound1, bound1)
    b1 = jax.random.uniform(k2, (1, emb_size), jnp.float32, -bound1, bound1)
    w2 = jax.random.uniform(k3, (emb_size, num_classes), jnp.float32, -bound2, bound2)
    b2 = jax.random.uniform(k4, (1, num_classes), jnp.float32, -bound2, bound2)
    return w1, b1, w2, b2


if __name__ == "__main__":
    key = jax.random.PRNGKey(0)
    kx, kp = jax.random.split(key)

    # Small "image-like" input: batch=2, channels=4, spatial=16x16 -> dim = 1024
    B, C, H, W = 2, 4, 16, 16
    dim = C * H * W
    emb_size = 256
    num_classes = 10

    x = jax.random.normal(kx, (B, C, H, W), jnp.float32)
    w1, b1, w2, b2 = init_params(kp, dim, emb_size, num_classes)

    prepared = prepare_params(w1, b1, w2, b2)   # one-time, hoisted out of forward
    out, emb = mlp_classifier_forward(x, prepared)
    out = jax.block_until_ready(out)
    emb = jax.block_until_ready(emb)

    # Reference in plain JAX with the same bf16-operand / f32-accumulate math.
    x2d = x.reshape(-1, dim)
    h_ref = jnp.maximum(
        jnp.dot(x2d.astype(jnp.bfloat16), w1.astype(jnp.bfloat16),
                preferred_element_type=jnp.float32) + b1, 0.0)
    h_ref_bf = h_ref.astype(jnp.bfloat16)
    out_ref = jnp.dot(h_ref_bf, w2.astype(jnp.bfloat16),
                      preferred_element_type=jnp.float32) + b2

    assert out.shape == (B, num_classes), out.shape
    assert emb.shape == (B, emb_size), emb.shape
    assert emb.dtype == jnp.bfloat16, emb.dtype
    assert jnp.allclose(out, out_ref, atol=2e-2, rtol=2e-2), (
        float(jnp.max(jnp.abs(out - out_ref))))
    assert jnp.allclose(emb.astype(jnp.float32), h_ref_bf.astype(jnp.float32),
                        atol=2e-2, rtol=2e-2), (
        float(jnp.max(jnp.abs(emb.astype(jnp.float32)
                              - h_ref_bf.astype(jnp.float32)))))

    print("KERNEL_OK")
</pallas_src>

<mosaic_0001>
module attributes {stable_mosaic.version = 11 : i64} {
  func.func @mlp_kernel(%arg0: i32, %arg1: memref<2x1024xf32, #tpu.memory_space<vmem>>, %arg2: memref<1024x256xbf16, #tpu.memory_space<vmem>>, %arg3: memref<1x256xf32, #tpu.memory_space<vmem>>, %arg4: memref<256x128xbf16, #tpu.memory_space<vmem>>, %arg5: memref<1x128xf32, #tpu.memory_space<vmem>>, %arg6: memref<2x128xf32, #tpu.memory_space<vmem>>, %arg7: memref<2x256xbf16, #tpu.memory_space<vmem>>) attributes {dimension_semantics = [#tpu.dimension_semantics<parallel>], iteration_bounds = array<i64: 1>, scalar_prefetch = 0 : i64, scratch_operands = 0 : i64, tpu.core_type = #tpu.core_type<tc>, window_params = [{transform_indices = @transform_0, window_bounds = array<i64: 2, 1024>}, {pipeline_mode = #tpu.pipeline_mode<synchronous>, transform_indices = @transform_1, window_bounds = array<i64: 1024, 256>}, {pipeline_mode = #tpu.pipeline_mode<synchronous>, transform_indices = @transform_2, window_bounds = array<i64: 1, 256>}, {pipeline_mode = #tpu.pipeline_mode<synchronous>, transform_indices = @transform_3, window_bounds = array<i64: 256, 128>}, {pipeline_mode = #tpu.pipeline_mode<synchronous>, transform_indices = @transform_4, window_bounds = array<i64: 1, 128>}, {transform_indices = @transform_5, window_bounds = array<i64: 2, 128>}, {transform_indices = @transform_6, window_bounds = array<i64: 2, 256>}]} {
    %c0 = arith.constant 0 : index
    %c0_0 = arith.constant 0 : index
    %0 = vector.load %arg1[%c0, %c0_0] : memref<2x1024xf32, #tpu.memory_space<vmem>>, vector<2x1024xf32>
    %1 = arith.truncf %0 : vector<2x1024xf32> to vector<2x1024xbf16>
    %c0_1 = arith.constant 0 : index
    %c0_2 = arith.constant 0 : index
    %2 = vector.load %arg2[%c0_1, %c0_2] : memref<1024x256xbf16, #tpu.memory_space<vmem>>, vector<1024x256xbf16>
    %cst = arith.constant dense<0.000000e+00> : vector<2x256xf32>
    %3 = tpu.matmul %1, %2, %cst {dimension_numbers = #tpu.dot_dimension_numbers<[1], [0], [0], [1], [0, 0, 1, 1], [], []>} : vector<2x1024xbf16>, vector<1024x256xbf16>, vector<2x256xf32> -> vector<2x256xf32>
    %c0_3 = arith.constant 0 : index
    %c0_4 = arith.constant 0 : index
    %4 = vector.load %arg3[%c0_3, %c0_4] : memref<1x256xf32, #tpu.memory_space<vmem>>, vector<1x256xf32>
    %5 = vector.broadcast %4 : vector<1x256xf32> to vector<2x256xf32>
    %6 = arith.addf %3, %5 : vector<2x256xf32>
    %cst_5 = arith.constant 0.000000e+00 : f32
    %7 = vector.broadcast %cst_5 : f32 to vector<2x256xf32>
    %8 = arith.maximumf %6, %7 : vector<2x256xf32>
    %9 = arith.truncf %8 : vector<2x256xf32> to vector<2x256xbf16>
    %c0_6 = arith.constant 0 : index
    %c0_7 = arith.constant 0 : index
    %10 = vector.load %arg7[%c0_6, %c0_7] : memref<2x256xbf16, #tpu.memory_space<vmem>>, vector<2x256xbf16>
    tpu.vector_store %arg7[%c0_6, %c0_7], %9 {strides = array<i32>} : memref<2x256xbf16, #tpu.memory_space<vmem>>, vector<2x256xbf16>,
    %c0_8 = arith.constant 0 : index
    %c0_9 = arith.constant 0 : index
    %11 = vector.load %arg4[%c0_8, %c0_9] : memref<256x128xbf16, #tpu.memory_space<vmem>>, vector<256x128xbf16>
    %cst_10 = arith.constant dense<0.000000e+00> : vector<2x128xf32>
    %12 = tpu.matmul %9, %11, %cst_10 {dimension_numbers = #tpu.dot_dimension_numbers<[1], [0], [0], [1], [0, 0, 1, 1], [], []>} : vector<2x256xbf16>, vector<256x128xbf16>, vector<2x128xf32> -> vector<2x128xf32>
    %c0_11 = arith.constant 0 : index
    %c0_12 = arith.constant 0 : index
    %13 = vector.load %arg5[%c0_11, %c0_12] : memref<1x128xf32, #tpu.memory_space<vmem>>, vector<1x128xf32>
    %14 = vector.broadcast %13 : vector<1x128xf32> to vector<2x128xf32>
    %15 = arith.addf %12, %14 : vector<2x128xf32>
    %c0_13 = arith.constant 0 : index
    %c0_14 = arith.constant 0 : index
    %16 = vector.load %arg6[%c0_13, %c0_14] : memref<2x128xf32, #tpu.memory_space<vmem>>, vector<2x128xf32>
    tpu.vector_store %arg6[%c0_13, %c0_14], %15 {strides = array<i32>} : memref<2x128xf32, #tpu.memory_space<vmem>>, vector<2x128xf32>,
    return
  }
  func.func @transform_0(%arg0: i32) -> (i32, i32) {
    %c0_i32 = arith.constant 0 : i32
    %c0_i32_0 = arith.constant 0 : i32
    return %arg0, %c0_i32 : i32, i32
  }
  func.func @transform_1(%arg0: i32) -> (i32, i32) {
    %c0_i32 = arith.constant 0 : i32
    %c0_i32_0 = arith.constant 0 : i32
    %c0_i32_1 = arith.constant 0 : i32
    return %c0_i32, %c0_i32_0 : i32, i32
  }
  func.func @transform_2(%arg0: i32) -> (i32, i32) {
    %c0_i32 = arith.constant 0 : i32
    %c0_i32_0 = arith.constant 0 : i32
    %c0_i32_1 = arith.constant 0 : i32
    return %c0_i32, %c0_i32_0 : i32, i32
  }
  func.func @transform_3(%arg0: i32) -> (i32, i32) {
    %c0_i32 = arith.constant 0 : i32
    %c0_i32_0 = arith.constant 0 : i32
    %c0_i32_1 = arith.constant 0 : i32
    return %c0_i32, %c0_i32_0 : i32, i32
  }
  func.func @transform_4(%arg0: i32) -> (i32, i32) {
    %c0_i32 = arith.constant 0 : i32
    %c0_i32_0 = arith.constant 0 : i32
    %c0_i32_1 = arith.constant 0 : i32
    return %c0_i32, %c0_i32_0 : i32, i32
  }
  func.func @transform_5(%arg0: i32) -> (i32, i32) {
    %c0_i32 = arith.constant 0 : i32
    %c0_i32_0 = arith.constant 0 : i32
    return %arg0, %c0_i32 : i32, i32
  }
  func.func @transform_6(%arg0: i32) -> (i32, i32) {
    %c0_i32 = arith.constant 0 : i32
    %c0_i32_0 = arith.constant 0 : i32
    return %arg0, %c0_i32 : i32, i32
  }
}

</mosaic_0001>

<llo_original>
// kernel: tpu_custom_call.1
$region0: #{tpu_custom_call.1}
  #allocation0 [shape = 'u32[]', space=smem, size = 0x4, offset = 0x4, fixed_abs, tag = 'smem constant byte address 0x4 - core index']
  #allocation1 [shape = 'u32[144,128]{1,0:T(1,128)}', space=vmem, size = 0x12000, scoped, tag = 'internal scratch']
  %s0 = inlined_call_operand.hbm [shape: f32[2,1024], index: 0, kind: input, shape index: {}]
  %s1 = inlined_call_operand.hbm [shape: bf16[1024,256], index: 1, kind: input, shape index: {}]
  %s2 = inlined_call_operand.vmem [shape: f32[1,256], index: 2, kind: input, shape index: {}]
  %s3 = inlined_call_operand.hbm [shape: bf16[256,128], index: 3, kind: input, shape index: {}]
  %s4 = inlined_call_operand.vmem [shape: f32[1,128], index: 4, kind: input, shape index: {}]
  %s5 = inlined_call_operand.hbm [shape: f32[2,128], index: 5, kind: output, shape index: {0}]
  %s6 = inlined_call_operand.hbm [shape: bf16[2,256], index: 6, kind: output, shape index: {1}]
  %7 = xla_tuple %s5, %s6
  %s8 = sld [smem:[#allocation0]]
  $region50: #{tpu_custom_call.1} parent=0
    _
  %s10 = ssub.s32 1, %s8
  %s11 = scalar_select 0, %s10, %s8
  $region1: #{tpu_custom_call.1} parent=0
    #allocation2 [shape = 'u8[8192]{0}', space=vmem, size = 0x2000, scoped, tag = 'input window, operand 0, single buffered']
    #allocation3 [shape = 's32[1]{0}', space=sflag, size = 0x4, scoped, tag = 'scoped memory for tpu_custom_call.1']
    #allocation4 [shape = 's32[1]{0}', space=sflag, size = 0x4, scoped, tag = 'scoped memory for tpu_custom_call.1']
    #allocation5 [shape = 'u8[524288]{0}', space=vmem, size = 0x80000, scoped, tag = 'input window, operand 1, single buffered']
    #allocation6 [shape = 's32[1]{0}', space=sflag, size = 0x4, scoped, tag = 'scoped memory for tpu_custom_call.1']
    #allocation7 [shape = 'u8[65536]{0}', space=vmem, size = 0x10000, scoped, tag = 'input window, operand 3, single buffered']
    #allocation8 [shape = 'u8[1024]{0}', space=vmem, size = 0x400, scoped, tag = 'output window, operand 0, single buffered']
    #allocation9 [shape = 'u8[1024]{0}', space=vmem, size = 0x400, scoped, tag = 'output window, operand 1, single buffered']
    #allocation10 [shape = 's32[1]{0}', space=sflag, size = 0x4, scoped, tag = 'scoped memory for tpu_custom_call.1']
    %12 = vsyncpa [#allocation3], 0
    %13 = vsyncpa [#allocation6], 0
    %14 = vsyncpa [#allocation4], 0
    %15 = vsyncpa [#allocation10], 0
    // Predicated region
    $region2: #{tpu_custom_call.1} parent=1 // pred_check
      _
    $region3: #{tpu_custom_call.1} parent=1 // pred_check_branch
      %17 = sbr.rel (0) target = $region5
    $region4: #{tpu_custom_call.1} parent=1 // pred_region
      %s19 = ssub.s32 256, 256
      %20 = vsyncadd [#allocation3], %s19
      %s22 = sshll.u32 [#allocation2], 4
      %s23 = int_to_ptr.vmem [resolvable:$true] %s22
      %25 = dma.hbm_to_vmem [thread:$0]  %s0, 256, %s23, [#allocation3]
    $region5: #{tpu_custom_call.1} parent=1 // pred_fallthru
      _
    // Predicated region
    $region6: #{tpu_custom_call.1} parent=1 // pred_check
      _
    $region7: #{tpu_custom_call.1} parent=1 // pred_check_branch
      %27 = sbr.rel (0) target = $region9
    $region8: #{tpu_custom_call.1} parent=1 // pred_region
      %s29 = ssub.s32 16384, 16384
      %30 = vsyncadd [#allocation6], %s29
      %s31 = sshll.u32 [#allocation5], 4
      %s32 = int_to_ptr.vmem [resolvable:$true] %s31
      %37 = dma.hbm_to_vmem [thread:$0]  %s1, 16384, %s32, [#allocation6], 128, 128, 8
    $region9: #{tpu_custom_call.1} parent=1 // pred_fallthru
      _
    // Predicated region
    $region10: #{tpu_custom_call.1} parent=1 // pred_check
      _
    $region11: #{tpu_custom_call.1} parent=1 // pred_check_branch
      %39 = sbr.rel (0) target = $region13
    $region12: #{tpu_custom_call.1} parent=1 // pred_region
      _
    $region13: #{tpu_custom_call.1} parent=1 // pred_fallthru
      _
    // Predicated region
    $region14: #{tpu_custom_call.1} parent=1 // pred_check
      _
    $region15: #{tpu_custom_call.1} parent=1 // pred_check_branch
      %41 = sbr.rel (0) target = $region17
    $region16: #{tpu_custom_call.1} parent=1 // pred_region
      %s43 = ssub.s32 2048, 2048
      %44 = vsyncadd [#allocation6], %s43
      %s45 = sshll.u32 [#allocation7], 4
      %s46 = int_to_ptr.vmem [resolvable:$true] %s45
      %51 = dma.hbm_to_vmem [thread:$0]  %s3, 2048, %s46, [#allocation6], 64, 64, 4
    $region17: #{tpu_custom_call.1} parent=1 // pred_fallthru
      _
    // Predicated region
    $region18: #{tpu_custom_call.1} parent=1 // pred_check
      _
    $region19: #{tpu_custom_call.1} parent=1 // pred_check_branch
      %53 = sbr.rel (0) target = $region21
    $region20: #{tpu_custom_call.1} parent=1 // pred_region
      _
    $region21: #{tpu_custom_call.1} parent=1 // pred_fallthru
      _
    // Predicated region
    $region22: #{tpu_custom_call.1} parent=1 // pred_check
      _
    $region23: #{tpu_custom_call.1} parent=1 // pred_check_branch
      %55 = sbr.rel (0) target = $region25
    $region24: #{tpu_custom_call.1} parent=1 // pred_region
      %56 = dma.done [#allocation3], 256
    $region25: #{tpu_custom_call.1} parent=1 // pred_fallthru
      _
    // Predicated region
    $region26: #{tpu_custom_call.1} parent=1 // pred_check
      _
    $region27: #{tpu_custom_call.1} parent=1 // pred_check_branch
      %58 = sbr.rel (0) target = $region29
    $region28: #{tpu_custom_call.1} parent=1 // pred_region
      %59 = dma.done [#allocation6], 16384
    $region29: #{tpu_custom_call.1} parent=1 // pred_fallthru
      _
    // Predicated region
    $region30: #{tpu_custom_call.1} parent=1 // pred_check
      _
    $region31: #{tpu_custom_call.1} parent=1 // pred_check_branch
      %61 = sbr.rel (0) target = $region33
    $region32: #{tpu_custom_call.1} parent=1 // pred_region
      %62 = dma.done [#allocation6], 2048
    $region33: #{tpu_custom_call.1} parent=1 // pred_fallthru
      _
    %v64 = vld [vmem:[#allocation2] sm:$0xff]
    %v65 = vld [vmem:[#allocation2 + $0x8] sm:$0xff]
    %v68 = vcombine.high %v64, %v64
    %v70 = vunpack.c.l.s4 1983009808
    %v71 = vunpack.c.0.s8 %v70
    %v72 = vlaneseq
    %v73 = vshrl.u32 %v72, 7
    %v74 = vsub.s32 %v71, %v73
    %v75 = vrot.slane %v64, %v74
    %v77 = vunpack.c.l.s4 1983009808
    %v78 = vunpack.c.0.s8 %v77
    %v79 = vlaneseq
    %v80 = vshrl.u32 %v79, 7
    %v81 = vsub.s32 %v78, %v80
    %v82 = vrot.slane %v68, %v81
    %v83 = vcombine.high %v75, %v75
    %v84 = vcombine.high %v82, %v82
    %v85 = vcombine.high %v65, %v65
    %v87 = vunpack.c.l.s4 1983009808
    %v88 = vunpack.c.0.s8 %v87
    %v89 = vlaneseq
    %v90 = vshrl.u32 %v89, 7
    %v91 = vsub.s32 %v88, %v90
    %v92 = vrot.slane %v65, %v91
    %v94 = vunpack.c.l.s4 1983009808
    %v95 = vunpack.c.0.s8 %v94
    %v96 = vlaneseq
    %v97 = vshrl.u32 %v96, 7
    %v98 = vsub.s32 %v95, %v97
    %v99 = vrot.slane %v85, %v98
    %v100 = vcombine.high %v92, %v92
    %v101 = vcombine.high %v99, %v99
    %v110 = vpack.c.bf16 %v75, %v75
    %v111 = vpack.c.bf16 %v83, %v83
    %v112 = vpack.c.bf16 %v82, %v82
    %v113 = vpack.c.bf16 %v84, %v84
    %v114 = vpack.c.bf16 %v92, %v92
    %v115 = vpack.c.bf16 %v100, %v100
    %v116 = vpack.c.bf16 %v99, %v99
    %v117 = vpack.c.bf16 %v101, %v101
    %v118 = vld [vmem:[#allocation5] sm:$0xff]
    %v119 = vld [vmem:[#allocation5 + $0x8] sm:$0xff]
    %v120 = vld [vmem:[#allocation5 + $0x10] sm:$0xff]
    %v121 = vld [vmem:[#allocation5 + $0x18] sm:$0xff]
    %v122 = vld [vmem:[#allocation5 + $0x20] sm:$0xff]
    %v123 = vld [vmem:[#allocation5 + $0x28] sm:$0xff]
    %v124 = vld [vmem:[#allocation5 + $0x30] sm:$0xff]
    %v125 = vld [vmem:[#allocation5 + $0x38] sm:$0xff]
    %v126 = vld [vmem:[#allocation5 + $0x40] sm:$0xff]
    %v127 = vld [vmem:[#allocation5 + $0x48] sm:$0xff]
    %v128 = vld [vmem:[#allocation5 + $0x50] sm:$0xff]
    %v129 = vld [vmem:[#allocation5 + $0x58] sm:$0xff]
    %v130 = vld [vmem:[#allocation5 + $0x60] sm:$0xff]
    %v131 = vld [vmem:[#allocation5 + $0x68] sm:$0xff]
    %v132 = vld [vmem:[#allocation5 + $0x70] sm:$0xff]
    %v133 = vld [vmem:[#allocation5 + $0x78] sm:$0xff]
    %v134 = vld [vmem:[#allocation5 + $0x80] sm:$0xff]
    %v135 = vld [vmem:[#allocation5 + $0x88] sm:$0xff]
    %v136 = vld [vmem:[#allocation5 + $0x90] sm:$0xff]
    %v137 = vld [vmem:[#allocation5 + $0x98] sm:$0xff]
    %v138 = vld [vmem:[#allocation5 + $0xa0] sm:$0xff]
    %v139 = vld [vmem:[#allocation5 + $0xa8] sm:$0xff]
    %v140 = vld [vmem:[#allocation5 + $0xb0] sm:$0xff]
    %v141 = vld [vmem:[#allocation5 + $0xb8] sm:$0xff]
    %v142 = vld [vmem:[#allocation5 + $0xc0] sm:$0xff]
    %v143 = vld [vmem:[#allocation5 + $0xc8] sm:$0xff]
    %v144 = vld [vmem:[#allocation5 + $0xd0] sm:$0xff]
    %v145 = vld [vmem:[#allocation5 + $0xd8] sm:$0xff]
    %v146 = vld [vmem:[#allocation5 + $0xe0] sm:$0xff]
    %v147 = vld [vmem:[#allocation5 + $0xe8] sm:$0xff]
    %v148 = vld [vmem:[#allocation5 + $0xf0] sm:$0xff]
    %v149 = vld [vmem:[#allocation5 + $0xf8] sm:$0xff]
    %v150 = vld [vmem:[#allocation5 + $0x100] sm:$0xff]
    %v151 = vld [vmem:[#allocation5 + $0x108] sm:$0xff]
    %v152 = vld [vmem:[#allocation5 + $0x110] sm:$0xff]
    %v153 = vld [vmem:[#allocation5 + $0x118] sm:$0xff]
    %v154 = vld [vmem:[#allocation5 + $0x120] sm:$0xff]
    %v155 = vld [vmem:[#allocation5 + $0x128] sm:$0xff]
    %v156 = vld [vmem:[#allocation5 + $0x130] sm:$0xff]
    %v157 = vld [vmem:[#allocation5 + $0x138] sm:$0xff]
    %v158 = vld [vmem:[#allocation5 + $0x140] sm:$0xff]
    %v159 = vld [vmem:[#allocation5 + $0x148] sm:$0xff]
    %v160 = vld [vmem:[#allocation5 + $0x150] sm:$0xff]
    %v161 = vld [vmem:[#allocation5 + $0x158] sm:$0xff]
    %v162 = vld [vmem:[#allocation5 + $0x160] sm:$0xff]
    %v163 = vld [vmem:[#allocation5 + $0x168] sm:$0xff]
    %v164 = vld [vmem:[#allocation5 + $0x170] sm:$0xff]
    %v165 = vld [vmem:[#allocation5 + $0x178] sm:$0xff]
    %v166 = vld [vmem:[#allocation5 + $0x180] sm:$0xff]
    %v167 = vld [vmem:[#allocation5 + $0x188] sm:$0xff]
    %v168 = vld [vmem:[#allocation5 + $0x190] sm:$0xff]
    %v169 = vld [vmem:[#allocation5 + $0x198] sm:$0xff]
    %v170 = vld [vmem:[#allocation5 + $0x1a0] sm:$0xff]
    %v171 = vld [vmem:[#allocation5 + $0x1a8] sm:$0xff]
    %v172 = vld [vmem:[#allocation5 + $0x1b0] sm:$0xff]
    %v173 = vld [vmem:[#allocation5 + $0x1b8] sm:$0xff]
    %v174 = vld [vmem:[#allocation5 + $0x1c0] sm:$0xff]
    %v175 = vld [vmem:[#allocation5 + $0x1c8] sm:$0xff]
    %v176 = vld [vmem:[#allocation5 + $0x1d0] sm:$0xff]
    %v177 = vld [vmem:[#allocation5 + $0x1d8] sm:$0xff]
    %v178 = vld [vmem:[#allocation5 + $0x1e0] sm:$0xff]
    %v179 = vld [vmem:[#allocation5 + $0x1e8] sm:$0xff]
    %v180 = vld [vmem:[#allocation5 + $0x1f0] sm:$0xff]
    %v181 = vld [vmem:[#allocation5 + $0x1f8] sm:$0xff]
    %v182 = vld [vmem:[#allocation5 + $0x200] sm:$0xff]
    %v183 = vld [vmem:[#allocation5 + $0x208] sm:$0xff]
    %v184 = vld [vmem:[#allocation5 + $0x210] sm:$0xff]
    %v185 = vld [vmem:[#allocation5 + $0x218] sm:$0xff]
    %v186 = vld [vmem:[#allocation5 + $0x220] sm:$0xff]
    %v187 = vld [vmem:[#allocation5 + $0x228] sm:$0xff]
    %v188 = vld [vmem:[#allocation5 + $0x230] sm:$0xff]
    %v189 = vld [vmem:[#allocation5 + $0x238] sm:$0xff]
    %v190 = vld [vmem:[#allocation5 + $0x240] sm:$0xff]
    %v191 = vld [vmem:[#allocation5 + $0x248] sm:$0xff]
    %v192 = vld [vmem:[#allocation5 + $0x250] sm:$0xff]
    %v193 = vld [vmem:[#allocation5 + $0x258] sm:$0xff]
    %v194 = vld [vmem:[#allocation5 + $0x260] sm:$0xff]
    %v195 = vld [vmem:[#allocation5 + $0x268] sm:$0xff]
    %v196 = vld [vmem:[#allocation5 + $0x270] sm:$0xff]
    %v197 = vld [vmem:[#allocation5 + $0x278] sm:$0xff]
    %v198 = vld [vmem:[#allocation5 + $0x280] sm:$0xff]
    %v199 = vld [vmem:[#allocation5 + $0x288] sm:$0xff]
    %v200 = vld [vmem:[#allocation5 + $0x290] sm:$0xff]
    %v201 = vld [vmem:[#allocation5 + $0x298] sm:$0xff]
    %v202 = vld [vmem:[#allocation5 + $0x2a0] sm:$0xff]
    %v203 = vld [vmem:[#allocation5 + $0x2a8] sm:$0xff]
    %v204 = vld [vmem:[#allocation5 + $0x2b0] sm:$0xff]
    %v205 = vld [vmem:[#allocation5 + $0x2b8] sm:$0xff]
    %v206 = vld [vmem:[#allocation5 + $0x2c0] sm:$0xff]
    %v207 = vld [vmem:[#allocation5 + $0x2c8] sm:$0xff]
    %v208 = vld [vmem:[#allocation5 + $0x2d0] sm:$0xff]
    %v209 = vld [vmem:[#allocation5 + $0x2d8] sm:$0xff]
    %v210 = vld [vmem:[#allocation5 + $0x2e0] sm:$0xff]
    %v211 = vld [vmem:[#allocation5 + $0x2e8] sm:$0xff]
    %v212 = vld [vmem:[#allocation5 + $0x2f0] sm:$0xff]
    %v213 = vld [vmem:[#allocation5 + $0x2f8] sm:$0xff]
    %v214 = vld [vmem:[#allocation5 + $0x300] sm:$0xff]
    %v215 = vld [vmem:[#allocation5 + $0x308] sm:$0xff]
    %v216 = vld [vmem:[#allocation5 + $0x310] sm:$0xff]
    %v217 = vld [vmem:[#allocation5 + $0x318] sm:$0xff]
    %v218 = vld [vmem:[#allocation5 + $0x320] sm:$0xff]
    %v219 = vld [vmem:[#allocation5 + $0x328] sm:$0xff]
    %v220 = vld [vmem:[#allocation5 + $0x330] sm:$0xff]
    %v221 = vld [vmem:[#allocation5 + $0x338] sm:$0xff]
    %v222 = vld [vmem:[#allocation5 + $0x340] sm:$0xff]
    %v223 = vld [vmem:[#allocation5 + $0x348] sm:$0xff]
    %v224 = vld [vmem:[#allocation5 + $0x350] sm:$0xff]
    %v225 = vld [vmem:[#allocation5 + $0x358] sm:$0xff]
    %v226 = vld [vmem:[#allocation5 + $0x360] sm:$0xff]
    %v227 = vld [vmem:[#allocation5 + $0x368] sm:$0xff]
    %v228 = vld [vmem:[#allocation5 + $0x370] sm:$0xff]
    %v229 = vld [vmem:[#allocation5 + $0x378] sm:$0xff]
    %v230 = vld [vmem:[#allocation5 + $0x380] sm:$0xff]
    %v231 = vld [vmem:[#allocation5 + $0x388] sm:$0xff]
    %v232 = vld [vmem:[#allocation5 + $0x390] sm:$0xff]
    %v233 = vld [vmem:[#allocation5 + $0x398] sm:$0xff]
    %v234 = vld [vmem:[#allocation5 + $0x3a0] sm:$0xff]
    %v235 = vld [vmem:[#allocation5 + $0x3a8] sm:$0xff]
    %v236 = vld [vmem:[#allocation5 + $0x3b0] sm:$0xff]
    %v237 = vld [vmem:[#allocation5 + $0x3b8] sm:$0xff]
    %v238 = vld [vmem:[#allocation5 + $0x3c0] sm:$0xff]
    %v239 = vld [vmem:[#allocation5 + $0x3c8] sm:$0xff]
    %v240 = vld [vmem:[#allocation5 + $0x3d0] sm:$0xff]
    %v241 = vld [vmem:[#allocation5 + $0x3d8] sm:$0xff]
    %v242 = vld [vmem:[#allocation5 + $0x3e0] sm:$0xff]
    %v243 = vld [vmem:[#allocation5 + $0x3e8] sm:$0xff]
    %v244 = vld [vmem:[#allocation5 + $0x3f0] sm:$0xff]
    %v245 = vld [vmem:[#allocation5 + $0x3f8] sm:$0xff]
    %v246 = vld [vmem:[%s2] sm:$0x3]
    %v248 = vlaneseq
    %v249 = vshrl.u32 %v248, 7
    %v250 = vsub.s32 0, %v249
    %v251 = vrot.slane %v246, %v250
    %v252 = vlaneseq
    %v253 = vshrl.u32 %v252, 7
    %v254 = vsub.s32 1, %v253
    %v255 = vrot.slane %v246, %v254
    %v386 = vunpack.c.l.b16 %v118
    %v387 = vunpack.c.h.b16 %v118
    %v388 = vunpack.c.l.b16 %v119
    %v389 = vunpack.c.h.b16 %v119
    %v390 = vunpack.c.l.b16 %v120
    %v391 = vunpack.c.h.b16 %v120
    %v392 = vunpack.c.l.b16 %v121
    %v393 = vunpack.c.h.b16 %v121
    %v394 = vunpack.c.l.b16 %v122
    %v395 = vunpack.c.h.b16 %v122
    %v396 = vunpack.c.l.b16 %v123
    %v397 = vunpack.c.h.b16 %v123
    %v398 = vunpack.c.l.b16 %v124
    %v399 = vunpack.c.h.b16 %v124
    %v400 = vunpack.c.l.b16 %v125
    %v401 = vunpack.c.h.b16 %v125
    %v402 = vunpack.c.l.b16 %v126
    %v403 = vunpack.c.h.b16 %v126
    %v404 = vunpack.c.l.b16 %v127
    %v405 = vunpack.c.h.b16 %v127
    %v406 = vunpack.c.l.b16 %v128
    %v407 = vunpack.c.h.b16 %v128
    %v408 = vunpack.c.l.b16 %v129
    %v409 = vunpack.c.h.b16 %v129
    %v410 = vunpack.c.l.b16 %v130
    %v411 = vunpack.c.h.b16 %v130
    %v412 = vunpack.c.l.b16 %v131
    %v413 = vunpack.c.h.b16 %v131
    %v414 = vunpack.c.l.b16 %v132
    %v415 = vunpack.c.h.b16 %v132
    %v416 = vunpack.c.l.b16 %v133
    %v417 = vunpack.c.h.b16 %v133
    %v418 = vunpack.c.l.b16 %v134
    %v419 = vunpack.c.h.b16 %v134
    %v420 = vunpack.c.l.b16 %v135
    %v421 = vunpack.c.h.b16 %v135
    %v422 = vunpack.c.l.b16 %v136
    %v423 = vunpack.c.h.b16 %v136
    %v424 = vunpack.c.l.b16 %v137
    %v425 = vunpack.c.h.b16 %v137
    %v426 = vunpack.c.l.b16 %v138
    %v427 = vunpack.c.h.b16 %v138
    %v428 = vunpack.c.l.b16 %v139
    %v429 = vunpack.c.h.b16 %v139
    %v430 = vunpack.c.l.b16 %v140
    %v431 = vunpack.c.h.b16 %v140
    %v432 = vunpack.c.l.b16 %v141
    %v433 = vunpack.c.h.b16 %v141
    %v434 = vunpack.c.l.b16 %v142
    %v435 = vunpack.c.h.b16 %v142
    %v436 = vunpack.c.l.b16 %v143
    %v437 = vunpack.c.h.b16 %v143
    %v438 = vunpack.c.l.b16 %v144
    %v439 = vunpack.c.h.b16 %v144
    %v440 = vunpack.c.l.b16 %v145
    %v441 = vunpack.c.h.b16 %v145
    %v442 = vunpack.c.l.b16 %v146
    %v443 = vunpack.c.h.b16 %v146
    %v444 = vunpack.c.l.b16 %v147
    %v445 = vunpack.c.h.b16 %v147
    %v446 = vunpack.c.l.b16 %v148
    %v447 = vunpack.c.h.b16 %v148
    %v448 = vunpack.c.l.b16 %v149
    %v449 = vunpack.c.h.b16 %v149
    %v450 = vunpack.c.l.b16 %v150
    %v451 = vunpack.c.h.b16 %v150
    %v452 = vunpack.c.l.b16 %v151
    %v453 = vunpack.c.h.b16 %v151
    %v454 = vunpack.c.l.b16 %v152
    %v455 = vunpack.c.h.b16 %v152
    %v456 = vunpack.c.l.b16 %v153
    %v457 = vunpack.c.h.b16 %v153
    %v458 = vunpack.c.l.b16 %v154
    %v459 = vunpack.c.h.b16 %v154
    %v460 = vunpack.c.l.b16 %v155
    %v461 = vunpack.c.h.b16 %v155
    %v462 = vunpack.c.l.b16 %v156
    %v463 = vunpack.c.h.b16 %v156
    %v464 = vunpack.c.l.b16 %v157
    %v465 = vunpack.c.h.b16 %v157
    %v466 = vunpack.c.l.b16 %v158
    %v467 = vunpack.c.h.b16 %v158
    %v468 = vunpack.c.l.b16 %v159
    %v469 = vunpack.c.h.b16 %v159
    %v470 = vunpack.c.l.b16 %v160
    %v471 = vunpack.c.h.b16 %v160
    %v472 = vunpack.c.l.b16 %v161
    %v473 = vunpack.c.h.b16 %v161
    %v474 = vunpack.c.l.b16 %v162
    %v475 = vunpack.c.h.b16 %v162
    %v476 = vunpack.c.l.b16 %v163
    %v477 = vunpack.c.h.b16 %v163
    %v478 = vunpack.c.l.b16 %v164
    %v479 = vunpack.c.h.b16 %v164
    %v480 = vunpack.c.l.b16 %v165
    %v481 = vunpack.c.h.b16 %v165
    %v482 = vunpack.c.l.b16 %v166
    %v483 = vunpack.c.h.b16 %v166
    %v484 = vunpack.c.l.b16 %v167
    %v485 = vunpack.c.h.b16 %v167
    %v486 = vunpack.c.l.b16 %v168
    %v487 = vunpack.c.h.b16 %v168
    %v488 = vunpack.c.l.b16 %v169
    %v489 = vunpack.c.h.b16 %v169
    %v490 = vunpack.c.l.b16 %v170
    %v491 = vunpack.c.h.b16 %v170
    %v492 = vunpack.c.l.b16 %v171
    %v493 = vunpack.c.h.b16 %v171
    %v494 = vunpack.c.l.b16 %v172
    %v495 = vunpack.c.h.b16 %v172
    %v496 = vunpack.c.l.b16 %v173
    %v497 = vunpack.c.h.b16 %v173
    %v498 = vunpack.c.l.b16 %v174
    %v499 = vunpack.c.h.b16 %v174
    %v500 = vunpack.c.l.b16 %v175
    %v501 = vunpack.c.h.b16 %v175
    %v502 = vunpack.c.l.b16 %v176
    %v503 = vunpack.c.h.b16 %v176
    %v504 = vunpack.c.l.b16 %v177
    %v505 = vunpack.c.h.b16 %v177
    %v506 = vunpack.c.l.b16 %v178
    %v507 = vunpack.c.h.b16 %v178
    %v508 = vunpack.c.l.b16 %v179
    %v509 = vunpack.c.h.b16 %v179
    %v510 = vunpack.c.l.b16 %v180
    %v511 = vunpack.c.h.b16 %v180
    %v512 = vunpack.c.l.b16 %v181
    %v513 = vunpack.c.h.b16 %v181
    %v514 = vunpack.c.l.b16 %v182
    %v515 = vunpack.c.h.b16 %v182
    %v516 = vunpack.c.l.b16 %v183
    %v517 = vunpack.c.h.b16 %v183
    %v518 = vunpack.c.l.b16 %v184
    %v519 = vunpack.c.h.b16 %v184
    %v520 = vunpack.c.l.b16 %v185
    %v521 = vunpack.c.h.b16 %v185
    %v522 = vunpack.c.l.b16 %v186
    %v523 = vunpack.c.h.b16 %v186
    %v524 = vunpack.c.l.b16 %v187
    %v525 = vunpack.c.h.b16 %v187
    %v526 = vunpack.c.l.b16 %v188
    %v527 = vunpack.c.h.b16 %v188
    %v528 = vunpack.c.l.b16 %v189
    %v529 = vunpack.c.h.b16 %v189
    %v530 = vunpack.c.l.b16 %v190
    %v531 = vunpack.c.h.b16 %v190
    %v532 = vunpack.c.l.b16 %v191
    %v533 = vunpack.c.h.b16 %v191
    %v534 = vunpack.c.l.b16 %v192
    %v535 = vunpack.c.h.b16 %v192
    %v536 = vunpack.c.l.b16 %v193
    %v537 = vunpack.c.h.b16 %v193
    %v538 = vunpack.c.l.b16 %v194
    %v539 = vunpack.c.h.b16 %v194
    %v540 = vunpack.c.l.b16 %v195
    %v541 = vunpack.c.h.b16 %v195
    %v542 = vunpack.c.l.b16 %v196
    %v543 = vunpack.c.h.b16 %v196
    %v544 = vunpack.c.l.b16 %v197
    %v545 = vunpack.c.h.b16 %v197
    %v546 = vunpack.c.l.b16 %v198
    %v547 = vunpack.c.h.b16 %v198
    %v548 = vunpack.c.l.b16 %v199
    %v549 = vunpack.c.h.b16 %v199
    %v550 = vunpack.c.l.b16 %v200
    %v551 = vunpack.c.h.b16 %v200
    %v552 = vunpack.c.l.b16 %v201
    %v553 = vunpack.c.h.b16 %v201
    %v554 = vunpack.c.l.b16 %v202
    %v555 = vunpack.c.h.b16 %v202
    %v556 = vunpack.c.l.b16 %v203
    %v557 = vunpack.c.h.b16 %v203
    %v558 = vunpack.c.l.b16 %v204
    %v559 = vunpack.c.h.b16 %v204
    %v560 = vunpack.c.l.b16 %v205
    %v561 = vunpack.c.h.b16 %v205
    %v562 = vunpack.c.l.b16 %v206
    %v563 = vunpack.c.h.b16 %v206
    %v564 = vunpack.c.l.b16 %v207
    %v565 = vunpack.c.h.b16 %v207
    %v566 = vunpack.c.l.b16 %v208
    %v567 = vunpack.c.h.b16 %v208
    %v568 = vunpack.c.l.b16 %v209
    %v569 = vunpack.c.h.b16 %v209
    %v570 = vunpack.c.l.b16 %v210
    %v571 = vunpack.c.h.b16 %v210
    %v572 = vunpack.c.l.b16 %v211
    %v573 = vunpack.c.h.b16 %v211
    %v574 = vunpack.c.l.b16 %v212
    %v575 = vunpack.c.h.b16 %v212
    %v576 = vunpack.c.l.b16 %v213
    %v577 = vunpack.c.h.b16 %v213
    %v578 = vunpack.c.l.b16 %v214
    %v579 = vunpack.c.h.b16 %v214
    %v580 = vunpack.c.l.b16 %v215
    %v581 = vunpack.c.h.b16 %v215
    %v582 = vunpack.c.l.b16 %v216
    %v583 = vunpack.c.h.b16 %v216
    %v584 = vunpack.c.l.b16 %v217
    %v585 = vunpack.c.h.b16 %v217
    %v586 = vunpack.c.l.b16 %v218
    %v587 = vunpack.c.h.b16 %v218
    %v588 = vunpack.c.l.b16 %v219
    %v589 = vunpack.c.h.b16 %v219
    %v590 = vunpack.c.l.b16 %v220
    %v591 = vunpack.c.h.b16 %v220
    %v592 = vunpack.c.l.b16 %v221
    %v593 = vunpack.c.h.b16 %v221
    %v594 = vunpack.c.l.b16 %v222
    %v595 = vunpack.c.h.b16 %v222
    %v596 = vunpack.c.l.b16 %v223
    %v597 = vunpack.c.h.b16 %v223
    %v598 = vunpack.c.l.b16 %v224
    %v599 = vunpack.c.h.b16 %v224
    %v600 = vunpack.c.l.b16 %v225
    %v601 = vunpack.c.h.b16 %v225
    %v602 = vunpack.c.l.b16 %v226
    %v603 = vunpack.c.h.b16 %v226
    %v604 = vunpack.c.l.b16 %v227
    %v605 = vunpack.c.h.b16 %v227
    %v606 = vunpack.c.l.b16 %v228
    %v607 = vunpack.c.h.b16 %v228
    %v608 = vunpack.c.l.b16 %v229
    %v609 = vunpack.c.h.b16 %v229
    %v610 = vunpack.c.l.b16 %v230
    %v611 = vunpack.c.h.b16 %v230
    %v612 = vunpack.c.l.b16 %v231
    %v613 = vunpack.c.h.b16 %v231
    %v614 = vunpack.c.l.b16 %v232
    %v615 = vunpack.c.h.b16 %v232
    %v616 = vunpack.c.l.b16 %v233
    %v617 = vunpack.c.h.b16 %v233
    %v618 = vunpack.c.l.b16 %v234
    %v619 = vunpack.c.h.b16 %v234
    %v620 = vunpack.c.l.b16 %v235
    %v621 = vunpack.c.h.b16 %v235
    %v622 = vunpack.c.l.b16 %v236
    %v623 = vunpack.c.h.b16 %v236
    %v624 = vunpack.c.l.b16 %v237
    %v625 = vunpack.c.h.b16 %v237
    %v626 = vunpack.c.l.b16 %v238
    %v627 = vunpack.c.h.b16 %v238
    %v628 = vunpack.c.l.b16 %v239
    %v629 = vunpack.c.h.b16 %v239
    %v630 = vunpack.c.l.b16 %v240
    %v631 = vunpack.c.h.b16 %v240
    %v632 = vunpack.c.l.b16 %v241
    %v633 = vunpack.c.h.b16 %v241
    %v634 = vunpack.c.l.b16 %v242
    %v635 = vunpack.c.h.b16 %v242
    %v636 = vunpack.c.l.b16 %v243
    %v637 = vunpack.c.h.b16 %v243
    %v638 = vunpack.c.l.b16 %v244
    %v639 = vunpack.c.h.b16 %v244
    %v640 = vunpack.c.l.b16 %v245
    %v641 = vunpack.c.h.b16 %v245
    %v642 = vpack.c.b16 %v388, %v386
    %v643 = vpack.c.b16 %v389, %v387
    %v644 = vpack.c.b16 %v392, %v390
    %v645 = vpack.c.b16 %v393, %v391
    %v646 = vpack.c.b16 %v396, %v394
    %v647 = vpack.c.b16 %v397, %v395
    %v648 = vpack.c.b16 %v400, %v398
    %v649 = vpack.c.b16 %v401, %v399
    %v650 = vpack.c.b16 %v404, %v402
    %v651 = vpack.c.b16 %v405, %v403
    %v652 = vpack.c.b16 %v408, %v406
    %v653 = vpack.c.b16 %v409, %v407
    %v654 = vpack.c.b16 %v412, %v410
    %v655 = vpack.c.b16 %v413, %v411
    %v656 = vpack.c.b16 %v416, %v414
    %v657 = vpack.c.b16 %v417, %v415
    %v658 = vpack.c.b16 %v420, %v418
    %v659 = vpack.c.b16 %v421, %v419
    %v660 = vpack.c.b16 %v424, %v422
    %v661 = vpack.c.b16 %v425, %v423
    %v662 = vpack.c.b16 %v428, %v426
    %v663 = vpack.c.b16 %v429, %v427
    %v664 = vpack.c.b16 %v432, %v430
    %v665 = vpack.c.b16 %v433, %v431
    %v666 = vpack.c.b16 %v436, %v434
    %v667 = vpack.c.b16 %v437, %v435
    %v668 = vpack.c.b16 %v440, %v438
    %v669 = vpack.c.b16 %v441, %v439
    %v670 = vpack.c.b16 %v444, %v442
    %v671 = vpack.c.b16 %v445, %v443
    %v672 = vpack.c.b16 %v448, %v446
    %v673 = vpack.c.b16 %v449, %v447
    %v674 = vpack.c.b16 %v452, %v450
    %v675 = vpack.c.b16 %v453, %v451
    %v676 = vpack.c.b16 %v456, %v454
    %v677 = vpack.c.b16 %v457, %v455
    %v678 = vpack.c.b16 %v460, %v458
    %v679 = vpack.c.b16 %v461, %v459
    %v680 = vpack.c.b16 %v464, %v462
    %v681 = vpack.c.b16 %v465, %v463
    %v682 = vpack.c.b16 %v468, %v466
    %v683 = vpack.c.b16 %v469, %v467
    %v684 = vpack.c.b16 %v472, %v470
    %v685 = vpack.c.b16 %v473, %v471
    %v686 = vpack.c.b16 %v476, %v474
    %v687 = vpack.c.b16 %v477, %v475
    %v688 = vpack.c.b16 %v480, %v478
    %v689 = vpack.c.b16 %v481, %v479
    %v690 = vpack.c.b16 %v484, %v482
    %v691 = vpack.c.b16 %v485, %v483
    %v692 = vpack.c.b16 %v488, %v486
    %v693 = vpack.c.b16 %v489, %v487
    %v694 = vpack.c.b16 %v492, %v490
    %v695 = vpack.c.b16 %v493, %v491
    %v696 = vpack.c.b16 %v496, %v494
    %v697 = vpack.c.b16 %v497, %v495
    %v698 = vpack.c.b16 %v500, %v498
    %v699 = vpack.c.b16 %v501, %v499
    %v700 = vpack.c.b16 %v504, %v502
    %v701 = vpack.c.b16 %v505, %v503
    %v702 = vpack.c.b16 %v508, %v506
    %v703 = vpack.c.b16 %v509, %v507
    %v704 = vpack.c.b16 %v512, %v510
    %v705 = vpack.c.b16 %v513, %v511
    %v706 = vpack.c.b16 %v516, %v514
    %v707 = vpack.c.b16 %v517, %v515
    %v708 = vpack.c.b16 %v520, %v518
    %v709 = vpack.c.b16 %v521, %v519
    %v710 = vpack.c.b16 %v524, %v522
    %v711 = vpack.c.b16 %v525, %v523
    %v712 = vpack.c.b16 %v528, %v526
    %v713 = vpack.c.b16 %v529, %v527
    %v714 = vpack.c.b16 %v532, %v530
    %v715 = vpack.c.b16 %v533, %v531
    %v716 = vpack.c.b16 %v536, %v534
    %v717 = vpack.c.b16 %v537, %v535
    %v718 = vpack.c.b16 %v540, %v538
    %v719 = vpack.c.b16 %v541, %v539
    %v720 = vpack.c.b16 %v544, %v542
    %v721 = vpack.c.b16 %v545, %v543
    %v722 = vpack.c.b16 %v548, %v546
    %v723 = vpack.c.b16 %v549, %v547
    %v724 = vpack.c.b16 %v552, %v550
    %v725 = vpack.c.b16 %v553, %v551
    %v726 = vpack.c.b16 %v556, %v554
    %v727 = vpack.c.b16 %v557, %v555
    %v728 = vpack.c.b16 %v560, %v558
    %v729 = vpack.c.b16 %v561, %v559
    %v730 = vpack.c.b16 %v564, %v562
    %v731 = vpack.c.b16 %v565, %v563
    %v732 = vpack.c.b16 %v568, %v566
    %v733 = vpack.c.b16 %v569, %v567
    %v734 = vpack.c.b16 %v572, %v570
    %v735 = vpack.c.b16 %v573, %v571
    %v736 = vpack.c.b16 %v576, %v574
    %v737 = vpack.c.b16 %v577, %v575
    %v738 = vpack.c.b16 %v580, %v578
    %v739 = vpack.c.b16 %v581, %v579
    %v740 = vpack.c.b16 %v584, %v582
    %v741 = vpack.c.b16 %v585, %v583
    %v742 = vpack.c.b16 %v588, %v586
    %v743 = vpack.c.b16 %v589, %v587
    %v744 = vpack.c.b16 %v592, %v590
    %v745 = vpack.c.b16 %v593, %v591
    %v746 = vpack.c.b16 %v596, %v594
    %v747 = vpack.c.b16 %v597, %v595
    %v748 = vpack.c.b16 %v600, %v598
    %v749 = vpack.c.b16 %v601, %v599
    %v750 = vpack.c.b16 %v604, %v602
    %v751 = vpack.c.b16 %v605, %v603
    %v752 = vpack.c.b16 %v608, %v606
    %v753 = vpack.c.b16 %v609, %v607
    %v754 = vpack.c.b16 %v612, %v610
    %v755 = vpack.c.b16 %v613, %v611
    %v756 = vpack.c.b16 %v616, %v614
    %v757 = vpack.c.b16 %v617, %v615
    %v758 = vpack.c.b16 %v620, %v618
    %v759 = vpack.c.b16 %v621, %v619
    %v760 = vpack.c.b16 %v624, %v622
    %v761 = vpack.c.b16 %v625, %v623
    %v762 = vpack.c.b16 %v628, %v626
    %v763 = vpack.c.b16 %v629, %v627
    %v764 = vpack.c.b16 %v632, %v630
    %v765 = vpack.c.b16 %v633, %v631
    %v766 = vpack.c.b16 %v636, %v634
    %v767 = vpack.c.b16 %v637, %v635
    %v768 = vpack.c.b16 %v640, %v638
    %v769 = vpack.c.b16 %v641, %v639
    %898 = vmatprep.subr.bf16.mxu0 %v643
    %899 = vmatpush1.bf16.msra.mxu0 %v642
    %900 = vmatprep.subr.bf16.mxu0 %v645
    %901 = vmatpush1.bf16.msra.mxu0 %v644
    %902 = vmatprep.subr.bf16.mxu0 %v647
    %903 = vmatpush1.bf16.msra.mxu0 %v646
    %904 = vmatprep.subr.bf16.mxu0 %v649
    %905 = vmatpush1.bf16.msra.mxu0 %v648
    %906 = vmatprep.subr.bf16.mxu0 %v651
    %907 = vmatpush1.bf16.msra.mxu0 %v650
    %908 = vmatprep.subr.bf16.mxu0 %v653
    %909 = vmatpush1.bf16.msra.mxu0 %v652
    %910 = vmatprep.subr.bf16.mxu0 %v655
    %911 = vmatpush1.bf16.msra.mxu0 %v654
    %912 = vmatprep.subr.bf16.mxu0 %v657
    %913 = vmatpush1.bf16.msra.mxu0 %v656
    %914 = vmatprep.subr.bf16.mxu0 %v659
    %915 = vmatpush1.bf16.msra.mxu0 %v658
    %916 = vmatprep.subr.bf16.mxu0 %v661
    %917 = vmatpush1.bf16.msra.mxu0 %v660
    %918 = vmatprep.subr.bf16.mxu0 %v663
    %919 = vmatpush1.bf16.msra.mxu0 %v662
    %920 = vmatprep.subr.bf16.mxu0 %v665
    %921 = vmatpush1.bf16.msra.mxu0 %v664
    %922 = vmatprep.subr.bf16.mxu0 %v667
    %923 = vmatpush1.bf16.msra.mxu0 %v666
    %924 = vmatprep.subr.bf16.mxu0 %v669
    %925 = vmatpush1.bf16.msra.mxu0 %v668
    %926 = vmatprep.subr.bf16.mxu0 %v671
    %927 = vmatpush1.bf16.msra.mxu0 %v670
    %928 = vmatprep.subr.bf16.mxu0 %v673
    %929 = vmatpush1.bf16.msra.mxu0 %v672
    %930 = vmatprep.mubr.bf16.mxu0 %v111
    %931 = vmatmul.mubr.bf16.gmra.mrb[0].mxu0 %v110
    %v932 = vpop.f32.mrb[0].mxu0
    %v933 = vadd.f32 %v251, %v932
    %v934 = vpop.f32.mrb[0].mxu0
    %v935 = vadd.f32 %v255, %v934
    %v936 = vpop.f32.mrb[0].mxu0
    %v937 = vpop.f32.mrb[0].mxu0
    %938 = vdwg.mxu0
    %939 = vmatprep.subr.bf16.mxu0 %v675
    %940 = vmatpush1.bf16.msra.mxu0 %v674
    %941 = vmatprep.subr.bf16.mxu0 %v677
    %942 = vmatpush1.bf16.msra.mxu0 %v676
    %943 = vmatprep.subr.bf16.mxu0 %v679
    %944 = vmatpush1.bf16.msra.mxu0 %v678
    %945 = vmatprep.subr.bf16.mxu0 %v681
    %946 = vmatpush1.bf16.msra.mxu0 %v680
    %947 = vmatprep.subr.bf16.mxu0 %v683
    %948 = vmatpush1.bf16.msra.mxu0 %v682
    %949 = vmatprep.subr.bf16.mxu0 %v685
    %950 = vmatpush1.bf16.msra.mxu0 %v684
    %951 = vmatprep.subr.bf16.mxu0 %v687
    %952 = vmatpush1.bf16.msra.mxu0 %v686
    %953 = vmatprep.subr.bf16.mxu0 %v689
    %954 = vmatpush1.bf16.msra.mxu0 %v688
    %955 = vmatprep.subr.bf16.mxu0 %v691
    %956 = vmatpush1.bf16.msra.mxu0 %v690
    %957 = vmatprep.subr.bf16.mxu0 %v693
    %958 = vmatpush1.bf16.msra.mxu0 %v692
    %959 = vmatprep.subr.bf16.mxu0 %v695
    %960 = vmatpush1.bf16.msra.mxu0 %v694
    %961 = vmatprep.subr.bf16.mxu0 %v697
    %962 = vmatpush1.bf16.msra.mxu0 %v696
    %963 = vmatprep.subr.bf16.mxu0 %v699
    %964 = vmatpush1.bf16.msra.mxu0 %v698
    %965 = vmatprep.subr.bf16.mxu0 %v701
    %966 = vmatpush1.bf16.msra.mxu0 %v700
    %967 = vmatprep.subr.bf16.mxu0 %v703
    %968 = vmatpush1.bf16.msra.mxu0 %v702
    %969 = vmatprep.subr.bf16.mxu0 %v705
    %970 = vmatpush1.bf16.msra.mxu0 %v704
    %971 = vmatprep.mubr.bf16.mxu0 %v113
    %972 = vmatmul.mubr.bf16.gmra.mrb[0].mxu0 %v112
    %v973 = vpop.f32.mrb[0].mxu0
    %v974 = vadd.f32 %v933, %v973
    %v975 = vpop.f32.mrb[0].mxu0
    %v976 = vadd.f32 %v935, %v975
    %v977 = vpop.f32.mrb[0].mxu0
    %v978 = vpop.f32.mrb[0].mxu0
    %979 = vdwg.mxu0
    %980 = vmatprep.subr.bf16.mxu0 %v707
    %981 = vmatpush1.bf16.msra.mxu0 %v706
    %982 = vmatprep.subr.bf16.mxu0 %v709
    %983 = vmatpush1.bf16.msra.mxu0 %v708
    %984 = vmatprep.subr.bf16.mxu0 %v711
    %985 = vmatpush1.bf16.msra.mxu0 %v710
    %986 = vmatprep.subr.bf16.mxu0 %v713
    %987 = vmatpush1.bf16.msra.mxu0 %v712
    %988 = vmatprep.subr.bf16.mxu0 %v715
    %989 = vmatpush1.bf16.msra.mxu0 %v714
    %990 = vmatprep.subr.bf16.mxu0 %v717
    %991 = vmatpush1.bf16.msra.mxu0 %v716
    %992 = vmatprep.subr.bf16.mxu0 %v719
    %993 = vmatpush1.bf16.msra.mxu0 %v718
    %994 = vmatprep.subr.bf16.mxu0 %v721
    %995 = vmatpush1.bf16.msra.mxu0 %v720
    %996 = vmatprep.subr.bf16.mxu0 %v723
    %997 = vmatpush1.bf16.msra.mxu0 %v722
    %998 = vmatprep.subr.bf16.mxu0 %v725
    %999 = vmatpush1.bf16.msra.mxu0 %v724
    %1000 = vmatprep.subr.bf16.mxu0 %v727
    %1001 = vmatpush1.bf16.msra.mxu0 %v726
    %1002 = vmatprep.subr.bf16.mxu0 %v729
    %1003 = vmatpush1.bf16.msra.mxu0 %v728
    %1004 = vmatprep.subr.bf16.mxu0 %v731
    %1005 = vmatpush1.bf16.msra.mxu0 %v730
    %1006 = vmatprep.subr.bf16.mxu0 %v733
    %1007 = vmatpush1.bf16.msra.mxu0 %v732
    %1008 = vmatprep.subr.bf16.mxu0 %v735
    %1009 = vmatpush1.bf16.msra.mxu0 %v734
    %1010 = vmatprep.subr.bf16.mxu0 %v737
    %1011 = vmatpush1.bf16.msra.mxu0 %v736
    %1012 = vmatprep.mubr.bf16.mxu0 %v115
    %1013 = vmatmul.mubr.bf16.gmra.mrb[0].mxu0 %v114
    %v1014 = vpop.f32.mrb[0].mxu0
    %v1015 = vadd.f32 %v974, %v1014
    %v1016 = vpop.f32.mrb[0].mxu0
    %v1017 = vadd.f32 %v976, %v1016
    %v1018 = vpop.f32.mrb[0].mxu0
    %v1019 = vpop.f32.mrb[0].mxu0
    %1020 = vdwg.mxu0
    %1021 = vmatprep.subr.bf16.mxu0 %v739
    %1022 = vmatpush1.bf16.msra.mxu0 %v738
    %1023 = vmatprep.subr.bf16.mxu0 %v741
    %1024 = vmatpush1.bf16.msra.mxu0 %v740
    %1025 = vmatprep.subr.bf16.mxu0 %v743
    %1026 = vmatpush1.bf16.msra.mxu0 %v742
    %1027 = vmatprep.subr.bf16.mxu0 %v745
    %1028 = vmatpush1.bf16.msra.mxu0 %v744
    %1029 = vmatprep.subr.bf16.mxu0 %v747
    %1030 = vmatpush1.bf16.msra.mxu0 %v746
    %1031 = vmatprep.subr.bf16.mxu0 %v749
    %1032 = vmatpush1.bf16.msra.mxu0 %v748
    %1033 = vmatprep.subr.bf16.mxu0 %v751
    %1034 = vmatpush1.bf16.msra.mxu0 %v750
    %1035 = vmatprep.subr.bf16.mxu0 %v753
    %1036 = vmatpush1.bf16.msra.mxu0 %v752
    %1037 = vmatprep.subr.bf16.mxu0 %v755
    %1038 = vmatpush1.bf16.msra.mxu0 %v754
    %1039 = vmatprep.subr.bf16.mxu0 %v757
    %1040 = vmatpush1.bf16.msra.mxu0 %v756
    %1041 = vmatprep.subr.bf16.mxu0 %v759
    %1042 = vmatpush1.bf16.msra.mxu0 %v758
    %1043 = vmatprep.subr.bf16.mxu0 %v761
    %1044 = vmatpush1.bf16.msra.mxu0 %v760
    %1045 = vmatprep.subr.bf16.mxu0 %v763
    %1046 = vmatpush1.bf16.msra.mxu0 %v762
    %1047 = vmatprep.subr.bf16.mxu0 %v765
    %1048 = vmatpush1.bf16.msra.mxu0 %v764
    %1049 = vmatprep.subr.bf16.mxu0 %v767
    %1050 = vmatpush1.bf16.msra.mxu0 %v766
    %1051 = vmatprep.subr.bf16.mxu0 %v769
    %1052 = vmatpush1.bf16.msra.mxu0 %v768
    %1053 = vmatprep.mubr.bf16.mxu0 %v117
    %1054 = vmatmul.mubr.bf16.gmra.mrb[0].mxu0 %v116
    %v1055 = vpop.f32.mrb[0].mxu0
    %v1056 = vadd.f32 %v1015, %v1055
    %v1057 = vpop.f32.mrb[0].mxu0
    %v1058 = vadd.f32 %v1017, %v1057
    %v1059 = vpop.f32.mrb[0].mxu0
    %v1060 = vpop.f32.mrb[0].mxu0
    %1061 = vdwg.mxu0
    %v1062 = vmax.f32 %v1056, 0.0
    %v1063 = vmax.f32 %v1058, 0.0
    %v1064 = vpack.c.bf16 %v1062, %v1062
    %v1065 = vpack.c.bf16 %v1063, %v1063
    %v1068 = vcombine.low %v1064, %v1065
    %v1070 = vunpack.c.l.s4 1966171168
    %v1071 = vunpack.c.0.s8 %v1070
    %v1072 = vlaneseq
    %v1073 = vshrl.u32 %v1072, 7
    %v1074 = vsub.s32 %v1071, %v1073
    %v1075 = vrot.slane %v1068, %v1074
    %v1077 = vunpack.c.l.s4 1966171168
    %v1078 = vunpack.c.0.s8 %v1077
    %v1079 = vlaneseq
    %v1080 = vshrl.u32 %v1079, 7
    %v1081 = vsub.s32 %v1078, %v1080
    %v1082 = vrot.slane %v1075, %v1081
    %1084 = vst [vmem:[#allocation9] sm:$0x3] %v1082
    %v1085 = vld [vmem:[#allocation7] sm:$0xf]
    %v1086 = vld [vmem:[#allocation7 + $0x4] sm:$0xf]
    %v1087 = vld [vmem:[#allocation7 + $0x8] sm:$0xf]
    %v1088 = vld [vmem:[#allocation7 + $0xc] sm:$0xf]
    %v1089 = vld [vmem:[#allocation7 + $0x10] sm:$0xf]
    %v1090 = vld [vmem:[#allocation7 + $0x14] sm:$0xf]
    %v1091 = vld [vmem:[#allocation7 + $0x18] sm:$0xf]
    %v1092 = vld [vmem:[#allocation7 + $0x1c] sm:$0xf]
    %v1093 = vld [vmem:[#allocation7 + $0x20] sm:$0xf]
    %v1094 = vld [vmem:[#allocation7 + $0x24] sm:$0xf]
    %v1095 = vld [vmem:[#allocation7 + $0x28] sm:$0xf]
    %v1096 = vld [vmem:[#allocation7 + $0x2c] sm:$0xf]
    %v1097 = vld [vmem:[#allocation7 + $0x30] sm:$0xf]
    %v1098 = vld [vmem:[#allocation7 + $0x34] sm:$0xf]
    %v1099 = vld [vmem:[#allocation7 + $0x38] sm:$0xf]
    %v1100 = vld [vmem:[#allocation7 + $0x3c] sm:$0xf]
    %v1101 = vld [vmem:[#allocation7 + $0x40] sm:$0xf]
    %v1102 = vld [vmem:[#allocation7 + $0x44] sm:$0xf]
    %v1103 = vld [vmem:[#allocation7 + $0x48] sm:$0xf]
    %v1104 = vld [vmem:[#allocation7 + $0x4c] sm:$0xf]
    %v1105 = vld [vmem:[#allocation7 + $0x50] sm:$0xf]
    %v1106 = vld [vmem:[#allocation7 + $0x54] sm:$0xf]
    %v1107 = vld [vmem:[#allocation7 + $0x58] sm:$0xf]
    %v1108 = vld [vmem:[#allocation7 + $0x5c] sm:$0xf]
    %v1109 = vld [vmem:[#allocation7 + $0x60] sm:$0xf]
    %v1110 = vld [vmem:[#allocation7 + $0x64] sm:$0xf]
    %v1111 = vld [vmem:[#allocation7 + $0x68] sm:$0xf]
    %v1112 = vld [vmem:[#allocation7 + $0x6c] sm:$0xf]
    %v1113 = vld [vmem:[#allocation7 + $0x70] sm:$0xf]
    %v1114 = vld [vmem:[#allocation7 + $0x74] sm:$0xf]
    %v1115 = vld [vmem:[#allocation7 + $0x78] sm:$0xf]
    %v1116 = vld [vmem:[#allocation7 + $0x7c] sm:$0xf]
    %v1117 = vld [vmem:[%s4] sm:$0x1]
    %v1119 = vlaneseq
    %v1120 = vshrl.u32 %v1119, 7
    %v1121 = vsub.s32 0, %v1120
    %v1122 = vrot.slane %v1117, %v1121
    %v1156 = vunpack.c.l.b16 %v1085
    %v1157 = vunpack.c.l.b16 %v1086
    %v1158 = vunpack.c.l.b16 %v1087
    %v1159 = vunpack.c.l.b16 %v1088
    %v1160 = vunpack.c.l.b16 %v1089
    %v1161 = vunpack.c.l.b16 %v1090
    %v1162 = vunpack.c.l.b16 %v1091
    %v1163 = vunpack.c.l.b16 %v1092
    %v1164 = vunpack.c.l.b16 %v1093
    %v1165 = vunpack.c.l.b16 %v1094
    %v1166 = vunpack.c.l.b16 %v1095
    %v1167 = vunpack.c.l.b16 %v1096
    %v1168 = vunpack.c.l.b16 %v1097
    %v1169 = vunpack.c.l.b16 %v1098
    %v1170 = vunpack.c.l.b16 %v1099
    %v1171 = vunpack.c.l.b16 %v1100
    %v1172 = vunpack.c.l.b16 %v1101
    %v1173 = vunpack.c.l.b16 %v1102
    %v1174 = vunpack.c.l.b16 %v1103
    %v1175 = vunpack.c.l.b16 %v1104
    %v1176 = vunpack.c.l.b16 %v1105
    %v1177 = vunpack.c.l.b16 %v1106
    %v1178 = vunpack.c.l.b16 %v1107
    %v1179 = vunpack.c.l.b16 %v1108
    %v1180 = vunpack.c.l.b16 %v1109
    %v1181 = vunpack.c.l.b16 %v1110
    %v1182 = vunpack.c.l.b16 %v1111
    %v1183 = vunpack.c.l.b16 %v1112
    %v1184 = vunpack.c.l.b16 %v1113
    %v1185 = vunpack.c.l.b16 %v1114
    %v1186 = vunpack.c.l.b16 %v1115
    %v1187 = vunpack.c.l.b16 %v1116
    %v1188 = vpack.c.b16 %v1157, %v1156
    %v1189 = vpack.c.b16 %v1159, %v1158
    %v1190 = vpack.c.b16 %v1161, %v1160
    %v1191 = vpack.c.b16 %v1163, %v1162
    %v1192 = vpack.c.b16 %v1165, %v1164
    %v1193 = vpack.c.b16 %v1167, %v1166
    %v1194 = vpack.c.b16 %v1169, %v1168
    %v1195 = vpack.c.b16 %v1171, %v1170
    %v1196 = vpack.c.b16 %v1173, %v1172
    %v1197 = vpack.c.b16 %v1175, %v1174
    %v1198 = vpack.c.b16 %v1177, %v1176
    %v1199 = vpack.c.b16 %v1179, %v1178
    %v1200 = vpack.c.b16 %v1181, %v1180
    %v1201 = vpack.c.b16 %v1183, %v1182
    %v1202 = vpack.c.b16 %v1185, %v1184
    %v1203 = vpack.c.b16 %v1187, %v1186
    %1220 = vmatprep.subr.bf16.mxu0 0
    %1221 = vmatpush1.bf16.msra.mxu0 %v1188
    %1222 = vmatprep.subr.bf16.mxu0 0
    %1223 = vmatpush1.bf16.msra.mxu0 %v1189
    %1224 = vmatprep.subr.bf16.mxu0 0
    %1225 = vmatpush1.bf16.msra.mxu0 %v1190
    %1226 = vmatprep.subr.bf16.mxu0 0
    %1227 = vmatpush1.bf16.msra.mxu0 %v1191
    %1228 = vmatprep.subr.bf16.mxu0 0
    %1229 = vmatpush1.bf16.msra.mxu0 %v1192
    %1230 = vmatprep.subr.bf16.mxu0 0
    %1231 = vmatpush1.bf16.msra.mxu0 %v1193
    %1232 = vmatprep.subr.bf16.mxu0 0
    %1233 = vmatpush1.bf16.msra.mxu0 %v1194
    %1234 = vmatprep.subr.bf16.mxu0 0
    %1235 = vmatpush1.bf16.msra.mxu0 %v1195
    %1236 = vmatprep.subr.bf16.mxu0 0
    %1237 = vmatpush1.bf16.msra.mxu0 %v1196
    %1238 = vmatprep.subr.bf16.mxu0 0
    %1239 = vmatpush1.bf16.msra.mxu0 %v1197
    %1240 = vmatprep.subr.bf16.mxu0 0
    %1241 = vmatpush1.bf16.msra.mxu0 %v1198
    %1242 = vmatprep.subr.bf16.mxu0 0
    %1243 = vmatpush1.bf16.msra.mxu0 %v1199
    %1244 = vmatprep.subr.bf16.mxu0 0
    %1245 = vmatpush1.bf16.msra.mxu0 %v1200
    %1246 = vmatprep.subr.bf16.mxu0 0
    %1247 = vmatpush1.bf16.msra.mxu0 %v1201
    %1248 = vmatprep.subr.bf16.mxu0 0
    %1249 = vmatpush1.bf16.msra.mxu0 %v1202
    %1250 = vmatprep.subr.bf16.mxu0 0
    %1251 = vmatpush1.bf16.msra.mxu0 %v1203
    %1252 = vmatprep.mubr.bf16.mxu0 %v1065
    %1253 = vmatmul.mubr.bf16.gmra.mrb[0].mxu0 %v1064
    %v1254 = vpop.f32.mrb[0].mxu0
    %v1255 = vadd.f32 %v1122, %v1254
    %v1256 = vpop.f32.mrb[0].mxu0
    %v1257 = vpop.f32.mrb[0].mxu0
    %v1258 = vpop.f32.mrb[0].mxu0
    %1259 = vdwg.mxu0
    %1260 = vst [vmem:[#allocation8] sm:$0x3] %v1255
    // Predicated region
    $region34: #{tpu_custom_call.1} parent=1 // pred_check
      _
    $region35: #{tpu_custom_call.1} parent=1 // pred_check_branch
      %1262 = sbr.rel (0) target = $region37
    $region36: #{tpu_custom_call.1} parent=1 // pred_region
      %s1264 = ssub.s32 32, 32
      %1265 = vsyncadd [#allocation4], %s1264
      %s1267 = sshll.u32 [#allocation8], 4
      %s1268 = int_to_ptr.vmem [resolvable:$true] %s1267
      %1270 = dma.vmem_to_hbm [thread:$0]  %s1268, 32, %s5, [#allocation4]
    $region37: #{tpu_custom_call.1} parent=1 // pred_fallthru
      _
    // Predicated region
    $region38: #{tpu_custom_call.1} parent=1 // pred_check
      _
    $region39: #{tpu_custom_call.1} parent=1 // pred_check_branch
      %1272 = sbr.rel (0) target = $region41
    $region40: #{tpu_custom_call.1} parent=1 // pred_region
      %s1274 = ssub.s32 32, 32
      %1275 = vsyncadd [#allocation10], %s1274
      %s1277 = sshll.u32 [#allocation9], 4
      %s1278 = int_to_ptr.vmem [resolvable:$true] %s1277
      %1280 = dma.vmem_to_hbm [thread:$0]  %s1278, 32, %s6, [#allocation10]
    $region41: #{tpu_custom_call.1} parent=1 // pred_fallthru
      _
    // Predicated region
    $region42: #{tpu_custom_call.1} parent=1 // pred_check
      _
    $region43: #{tpu_custom_call.1} parent=1 // pred_check_branch
      %1282 = sbr.rel (0) target = $region45
    $region44: #{tpu_custom_call.1} parent=1 // pred_region
      %1283 = dma.done [#allocation4], 32
    $region45: #{tpu_custom_call.1} parent=1 // pred_fallthru
      _
    // Predicated region
    $region46: #{tpu_custom_call.1} parent=1 // pred_check
      _
    $region47: #{tpu_custom_call.1} parent=1 // pred_check_branch
      %1285 = sbr.rel (0) target = $region49
    $region48: #{tpu_custom_call.1} parent=1 // pred_region
      %1286 = dma.done [#allocation10], 32
    $region49: #{tpu_custom_call.1} parent=1 // pred_fallthru
      _
    %1287 = vsyncpa [#allocation3], 1
    %1288 = vsyncpa [#allocation6], 1
    %1289 = vsyncpa [#allocation4], 1
    %1290 = vsyncpa [#allocation10], 1

</llo_original>
